<compile_context>
chip_gen: v7x
topology: tpu7x:2x2x1
jax: 0.10.0
libtpu: 0.0.40
codegen_flags: <defaults>
</compile_context>

<pallas_src>
import functools

import jax
import jax.numpy as jnp
from jax import lax
from jax.experimental import pallas as pl
from jax.experimental.pallas import tpu as pltpu

IN_DIM = 4      # x.shape[1] + 1 in the original script
WIDTH = 64      # network_width
OUT_DIM = 1
MAX_TILE_B = 2048   # default cap; sweep 1024/2048/4096 if tuning for large B


def _choose_tile_b(B):
    """Lane-aligned (x128) batch tile, big enough to amortize the ~0.35 us
    grid-step overhead, but keeping >= 2 grid steps when B allows so v7x can
    shard the 'parallel' batch axis across its 2 TensorCores."""
    b128 = ((B + 127) // 128) * 128
    if b128 <= 256:
        return b128
    half = ((b128 + 255) // 256) * 128      # ~B/2 rounded up to 128
    return min(MAX_TILE_B, half)


def _discriminator_kernel(x_ref, w1_ref, b1_ref, w2_ref, b2_ref,
                          w3_ref, b3_ref, ot_ref, *, matmul_dtype):
    """Fused MLP forward for one batch tile; activations kept feature-major so
    the batch dimension stays on the 128-lane axis (lane-dense I/O).

    x_ref  : (tile_b, IN_DIM)   natural PyTorch input layout
    w1_ref : (WIDTH, IN_DIM)    PyTorch (out, in)
    b1_ref : (WIDTH, 1)
    w2_ref : (WIDTH, WIDTH)     PyTorch (out, in)
    b2_ref : (WIDTH, 1)
    w3_ref : (WIDTH, 1)         PyTorch (1, WIDTH) transposed
    b3_ref : (1, 1)
    ot_ref : (1, tile_b)        lane-dense output tile
    """
    x = x_ref[...].astype(matmul_dtype)                           # (tile_b, 4)

    # ---- Layer 1: h1 = W1 @ x^T, contracting the two 4-wide dims on the MXU
    # ('md,nd->mn', no explicit transpose).  K=4 underfills the MXU but the
    # MXU has slack; this keeps the VALU (the binding slot) free.
    h1 = lax.dot_general(w1_ref[...].astype(matmul_dtype), x,
                         dimension_numbers=(((1,), (1,)), ((), ())),
                         preferred_element_type=jnp.float32)      # (64, tile_b)
    h1 = h1 + b1_ref[...]
    h1 = jnp.maximum(h1, 0.2 * h1)                                # LeakyReLU(0.2)

    # ---- Layer 2: 64x64 GEMM on the MXU (bf16 operands, f32 accumulation).
    h2 = jnp.dot(w2_ref[...].astype(matmul_dtype), h1.astype(matmul_dtype),
                 preferred_element_type=jnp.float32)              # (64, tile_b)
    h2 = h2 + b2_ref[...]
    h2 = jnp.maximum(h2, 0.2 * h2)                                # LeakyReLU(0.2)

    # ---- Layer 3: Linear(64, 1) as VPU multiply + sublane (XLU) reduction;
    # result is already the lane-dense (1, tile_b) slab.
    h3 = jnp.sum(h2 * w3_ref[...], axis=0, keepdims=True) + b3_ref[...]
    ot_ref[...] = jax.nn.sigmoid(h3).astype(ot_ref.dtype)


@functools.partial(jax.jit, static_argnames=("tile_b", "matmul_dtype"))
def discriminator_forward(x, params, *, tile_b=None, matmul_dtype=jnp.bfloat16):
    """x: (B, 4) float32. Returns (B, 1) float32 in [0, 1].

    tile_b: batch rows per grid step (multiple of 128).  None -> adaptive:
            ~min(2048, B/2) so grid-step overhead is amortized while keeping
            >= 2 steps for v7x's two TensorCores.  Sweep 1024-4096 for huge B.
    matmul_dtype: bf16 (default) feeds the MXU its native dtype with f32
            accumulation (~1e-3 output error); use jnp.float32 for exactness.
    """
    w1, b1, w2, b2, w3, b3 = params
    B = x.shape[0]
    if tile_b is None:
        tile_b = _choose_tile_b(B)
    assert tile_b % 128 == 0, "tile_b must be a multiple of 128"

    # Pad batch up to a multiple of tile_b (no-op when already aligned);
    # padded rows are finite garbage and sliced off below.
    B_pad = -(-B // tile_b) * tile_b
    if B_pad != B:
        x = jnp.pad(x, ((0, B_pad - B), (0, 0)))

    grid = (B_pad // tile_b,)
    const = lambda shape: pl.BlockSpec(shape, lambda i: (0, 0))  # grid-invariant

    out_t = pl.pallas_call(
        functools.partial(_discriminator_kernel, matmul_dtype=matmul_dtype),
        out_shape=jax.ShapeDtypeStruct((1, B_pad), jnp.float32),
        grid_spec=pltpu.PrefetchScalarGridSpec(
            num_scalar_prefetch=0,
            grid=grid,
            in_specs=[
                pl.BlockSpec((tile_b, IN_DIM), lambda i: (i, 0)),  # x tile
                const((WIDTH, IN_DIM)),                            # W1
                const((WIDTH, 1)),                                 # b1
                const((WIDTH, WIDTH)),                             # W2
                const((WIDTH, 1)),                                 # b2
                const((WIDTH, 1)),                                 # w3 (column)
                const((1, 1)),                                     # b3
            ],
            out_specs=pl.BlockSpec((1, tile_b), lambda i: (0, i)),  # lane-dense
        ),
        compiler_params=pltpu.CompilerParams(
            # batch grid axis is independent -> megacore sharding on v7x
            dimension_semantics=("parallel",)),
    )(x, w1, b1, w2, b2, w3, b3)

    # (1, B_pad) -> (B_pad, 1) is a free row-major reshape (same bytes).
    return out_t.reshape(B_pad, OUT_DIM)[:B]


def init_params(key):
    """Deterministic synthetic parameters (PyTorch-Linear-like uniform init).

    Kernel-ready layout:
      w1 (64, 4), b1 (64, 1), w2 (64, 64), b2 (64, 1), w3 (64, 1), b3 (1, 1)
    (w1/w2 are PyTorch's (out, in); w3 is PyTorch's (1, 64) transposed.)
    """
    ks = jax.random.split(key, 6)

    def lin(kw, kb, fan_in, fan_out):
        bound = 1.0 / jnp.sqrt(fan_in)
        w = jax.random.uniform(kw, (fan_out, fan_in), jnp.float32, -bound, bound)
        b = jax.random.uniform(kb, (fan_out, 1), jnp.float32, -bound, bound)
        return w, b

    w1, b1 = lin(ks[0], ks[1], IN_DIM, WIDTH)
    w2, b2 = lin(ks[2], ks[3], WIDTH, WIDTH)
    w3_pt, b3 = lin(ks[4], ks[5], WIDTH, OUT_DIM)   # w3_pt: (1, 64)
    return (w1, b1, w2, b2, w3_pt.T, b3)            # store w3 as (64, 1) column


def reference_forward(x, params):
    """Pure-JAX reference matching the PyTorch module (batch-major layout)."""
    w1, b1, w2, b2, w3, b3 = params
    h = x @ w1.T + b1.T
    h = jnp.where(h > 0, h, 0.2 * h)
    h = h @ w2.T + b2.T
    h = jnp.where(h > 0, h, 0.2 * h)
    h = h @ w3 + b3                      # w3 is (64, 1), b3 is (1, 1)
    return jax.nn.sigmoid(h)


if __name__ == "__main__":
    key = jax.random.PRNGKey(0)
    k_x, k_x2, k_p = jax.random.split(key, 3)
    params = init_params(k_p)

    # Small batch (single 128-lane tile, grid = 1).
    B = 16
    x = jax.random.normal(k_x, (B, IN_DIM), jnp.float32)
    ref = reference_forward(x, params)

    # Exact f32 MXU path: tight check against the pure-JAX reference.
    out_f32 = jax.block_until_ready(
        discriminator_forward(x, params, matmul_dtype=jnp.float32))
    assert out_f32.shape == (B, OUT_DIM)
    assert jnp.allclose(out_f32, ref, atol=1e-5, rtol=1e-5), "f32 mismatch"

    # Default bf16-operand path (f32 accumulation): looser tolerance.
    out_bf = jax.block_until_ready(discriminator_forward(x, params))
    assert out_bf.shape == (B, OUT_DIM)
    assert jnp.allclose(out_bf, ref, atol=1e-2, rtol=1e-2), "bf16 mismatch"

    # Ragged batch spanning multiple grid steps (exercises padding + grid = 2).
    B2 = 700
    x2 = jax.random.normal(k_x2, (B2, IN_DIM), jnp.float32)
    ref2 = reference_forward(x2, params)
    out2 = jax.block_until_ready(discriminator_forward(x2, params))
    assert out2.shape == (B2, OUT_DIM)
    assert jnp.allclose(out2, ref2, atol=1e-2, rtol=1e-2), "bf16 mismatch (ragged)"
    out2_f32 = jax.block_until_ready(
        discriminator_forward(x2, params, matmul_dtype=jnp.float32))
    assert jnp.allclose(out2_f32, ref2, atol=1e-5, rtol=1e-5), "f32 mismatch (ragged)"

    print("KERNEL_OK")
</pallas_src>

<mosaic_0001>
module attributes {stable_mosaic.version = 11 : i64} {
  func.func @_discriminator_kernel(%arg0: i32, %arg1: memref<128x4xf32, #tpu.memory_space<vmem>>, %arg2: memref<64x4xf32, #tpu.memory_space<vmem>>, %arg3: memref<64x1xf32, #tpu.memory_space<vmem>>, %arg4: memref<64x64xf32, #tpu.memory_space<vmem>>, %arg5: memref<64x1xf32, #tpu.memory_space<vmem>>, %arg6: memref<64x1xf32, #tpu.memory_space<vmem>>, %arg7: memref<1x1xf32, #tpu.memory_space<vmem>>, %arg8: memref<1x128xf32, #tpu.memory_space<vmem>>) attributes {dimension_semantics = [#tpu.dimension_semantics<parallel>], iteration_bounds = array<i64: 1>, scalar_prefetch = 0 : i64, scratch_operands = 0 : i64, tpu.core_type = #tpu.core_type<tc>, window_params = [{transform_indices = @transform_0, window_bounds = array<i64: 128, 4>}, {pipeline_mode = #tpu.pipeline_mode<synchronous>, transform_indices = @transform_1, window_bounds = array<i64: 64, 4>}, {pipeline_mode = #tpu.pipeline_mode<synchronous>, transform_indices = @transform_2, window_bounds = array<i64: 64, 1>}, {pipeline_mode = #tpu.pipeline_mode<synchronous>, transform_indices = @transform_3, window_bounds = array<i64: 64, 64>}, {pipeline_mode = #tpu.pipeline_mode<synchronous>, transform_indices = @transform_4, window_bounds = array<i64: 64, 1>}, {pipeline_mode = #tpu.pipeline_mode<synchronous>, transform_indices = @transform_5, window_bounds = array<i64: 64, 1>}, {pipeline_mode = #tpu.pipeline_mode<synchronous>, transform_indices = @transform_6, window_bounds = array<i64: 1, 1>}, {transform_indices = @transform_7, window_bounds = array<i64: 1, 128>}]} {
    %c0 = arith.constant 0 : index
    %c0_0 = arith.constant 0 : index
    %0 = vector.load %arg1[%c0, %c0_0] : memref<128x4xf32, #tpu.memory_space<vmem>>, vector<128x4xf32>
    %c0_1 = arith.constant 0 : index
    %c0_2 = arith.constant 0 : index
    %1 = vector.load %arg2[%c0_1, %c0_2] : memref<64x4xf32, #tpu.memory_space<vmem>>, vector<64x4xf32>
    %cst = arith.constant dense<0.000000e+00> : vector<64x128xf32>
    %2 = tpu.matmul %1, %0, %cst {dimension_numbers = #tpu.dot_dimension_numbers<[1], [1], [0], [0], [0, 0, 1, 0], [], []>} : vector<64x4xf32>, vector<128x4xf32>, vector<64x128xf32> -> vector<64x128xf32>
    %c0_3 = arith.constant 0 : index
    %c0_4 = arith.constant 0 : index
    %3 = vector.load %arg3[%c0_3, %c0_4] : memref<64x1xf32, #tpu.memory_space<vmem>>, vector<64x1xf32>
    %4 = vector.broadcast %3 : vector<64x1xf32> to vector<64x128xf32>
    %5 = arith.addf %2, %4 : vector<64x128xf32>
    %cst_5 = arith.constant 2.000000e-01 : f32
    %6 = vector.broadcast %cst_5 : f32 to vector<64x128xf32>
    %7 = arith.mulf %6, %5 : vector<64x128xf32>
    %8 = arith.maximumf %5, %7 : vector<64x128xf32>
    %c0_6 = arith.constant 0 : index
    %c0_7 = arith.constant 0 : index
    %9 = vector.load %arg4[%c0_6, %c0_7] : memref<64x64xf32, #tpu.memory_space<vmem>>, vector<64x64xf32>
    %cst_8 = arith.constant dense<0.000000e+00> : vector<64x128xf32>
    %10 = tpu.matmul %9, %8, %cst_8 {dimension_numbers = #tpu.dot_dimension_numbers<[1], [0], [0], [1], [0, 0, 1, 1], [], []>} : vector<64x64xf32>, vector<64x128xf32>, vector<64x128xf32> -> vector<64x128xf32>
    %c0_9 = arith.constant 0 : index
    %c0_10 = arith.constant 0 : index
    %11 = vector.load %arg5[%c0_9, %c0_10] : memref<64x1xf32, #tpu.memory_space<vmem>>, vector<64x1xf32>
    %12 = vector.broadcast %11 : vector<64x1xf32> to vector<64x128xf32>
    %13 = arith.addf %10, %12 : vector<64x128xf32>
    %cst_11 = arith.constant 2.000000e-01 : f32
    %14 = vector.broadcast %cst_11 : f32 to vector<64x128xf32>
    %15 = arith.mulf %14, %13 : vector<64x128xf32>
    %16 = arith.maximumf %13, %15 : vector<64x128xf32>
    %c0_12 = arith.constant 0 : index
    %c0_13 = arith.constant 0 : index
    %17 = vector.load %arg6[%c0_12, %c0_13] : memref<64x1xf32, #tpu.memory_space<vmem>>, vector<64x1xf32>
    %18 = vector.broadcast %17 : vector<64x1xf32> to vector<64x128xf32>
    %19 = arith.mulf %16, %18 : vector<64x128xf32>
    %cst_14 = arith.constant dense<0.000000e+00> : vector<128xf32>
    %20 = vector.multi_reduction <add>, %19, %cst_14 [0] : vector<64x128xf32> to vector<128xf32>
    %21 = vector.shape_cast %20 : vector<128xf32> to vector<1x128xf32>
    %c0_15 = arith.constant 0 : index
    %c0_16 = arith.constant 0 : index
    %22 = vector.load %arg7[%c0_15, %c0_16] : memref<1x1xf32, #tpu.memory_space<vmem>>, vector<1x1xf32>
    %23 = vector.broadcast %22 : vector<1x1xf32> to vector<1x128xf32>
    %24 = arith.addf %21, %23 : vector<1x128xf32>
    %25 = arith.negf %24 : vector<1x128xf32>
    %26 = math.exp %25 : vector<1x128xf32>
    %cst_17 = arith.constant 1.000000e+00 : f32
    %27 = vector.broadcast %cst_17 : f32 to vector<1x128xf32>
    %28 = arith.addf %27, %26 : vector<1x128xf32>
    %29 = arith.divf %27, %28 : vector<1x128xf32>
    %c0_18 = arith.constant 0 : index
    %c0_19 = arith.constant 0 : index
    %30 = vector.load %arg8[%c0_18, %c0_19] : memref<1x128xf32, #tpu.memory_space<vmem>>, vector<1x128xf32>
    tpu.vector_store %arg8[%c0_18, %c0_19], %29 {strides = array<i32>} : memref<1x128xf32, #tpu.memory_space<vmem>>, vector<1x128xf32>,
    return
  }
  func.func @transform_0(%arg0: i32) -> (i32, i32) {
    %c0_i32 = arith.constant 0 : i32
    %c0_i32_0 = arith.constant 0 : i32
    return %arg0, %c0_i32 : i32, i32
  }
  func.func @transform_1(%arg0: i32) -> (i32, i32) {
    %c0_i32 = arith.constant 0 : i32
    %c0_i32_0 = arith.constant 0 : i32
    %c0_i32_1 = arith.constant 0 : i32
    return %c0_i32, %c0_i32_0 : i32, i32
  }
  func.func @transform_2(%arg0: i32) -> (i32, i32) {
    %c0_i32 = arith.constant 0 : i32
    %c0_i32_0 = arith.constant 0 : i32
    %c0_i32_1 = arith.constant 0 : i32
    return %c0_i32, %c0_i32_0 : i32, i32
  }
  func.func @transform_3(%arg0: i32) -> (i32, i32) {
    %c0_i32 = arith.constant 0 : i32
    %c0_i32_0 = arith.constant 0 : i32
    %c0_i32_1 = arith.constant 0 : i32
    return %c0_i32, %c0_i32_0 : i32, i32
  }
  func.func @transform_4(%arg0: i32) -> (i32, i32) {
    %c0_i32 = arith.constant 0 : i32
    %c0_i32_0 = arith.constant 0 : i32
    %c0_i32_1 = arith.constant 0 : i32
    return %c0_i32, %c0_i32_0 : i32, i32
  }
  func.func @transform_5(%arg0: i32) -> (i32, i32) {
    %c0_i32 = arith.constant 0 : i32
    %c0_i32_0 = arith.constant 0 : i32
    %c0_i32_1 = arith.constant 0 : i32
    return %c0_i32, %c0_i32_0 : i32, i32
  }
  func.func @transform_6(%arg0: i32) -> (i32, i32) {
    %c0_i32 = arith.constant 0 : i32
    %c0_i32_0 = arith.constant 0 : i32
    %c0_i32_1 = arith.constant 0 : i32
    return %c0_i32, %c0_i32_0 : i32, i32
  }
  func.func @transform_7(%arg0: i32) -> (i32, i32) {
    %c0_i32 = arith.constant 0 : i32
    %c0_i32_0 = arith.constant 0 : i32
    return %c0_i32, %arg0 : i32, i32
  }
}

</mosaic_0001>

<llo_original>
// kernel: discriminator_forward.1
$region0: #{discriminator_forward.1}
  #allocation0 [shape = 'u32[]', space=smem, size = 0x4, offset = 0x4, fixed_abs, tag = 'smem constant byte address 0x4 - core index']
  #allocation1 [shape = 'u32[144,128]{1,0:T(1,128)}', space=vmem, size = 0x12000, scoped, tag = 'internal scratch']
  #allocation2 [shape = 'f32[1,1]{1,0:T(1,128)S(1)}', space=vmem, size = 0x200, scoped, tag = 'scoped memory for discriminator_forward.1']
  %s0 = inlined_call_operand.vmem [shape: f32[128,4], index: 0, kind: input, shape index: {}]
  %s1 = inlined_call_operand.vmem [shape: f32[64,4], index: 1, kind: input, shape index: {}]
  %s2 = inlined_call_operand.vmem [shape: f32[64,1], index: 2, kind: input, shape index: {}]
  %s3 = inlined_call_operand.vmem [shape: f32[64,64], index: 3, kind: input, shape index: {}]
  %s4 = inlined_call_operand.vmem [shape: f32[64,1], index: 4, kind: input, shape index: {}]
  %s5 = inlined_call_operand.vmem [shape: f32[64,1], index: 5, kind: input, shape index: {}]
  %s6 = inlined_call_operand.<no memory space> [shape: f32[1,1], index: 6, kind: input, shape index: {}]
  %s7 = inlined_call_operand.vmem [shape: f32[1,128], index: 7, kind: output, shape index: {}]
  %s8 = sld [smem:[#allocation0]]
  $region38: #{discriminator_forward.1} parent=0
    _
  %s10 = ssub.s32 1, %s8
  %s11 = scalar_select 0, %s10, %s8
  %v12 = vstv %s6
  %13 = vst [vmem:[#allocation2] sm:$0x1] %v12
  // Predicated region
  $region2: #{discriminator_forward.1} parent=0 // pred_check
    _
  $region3: #{discriminator_forward.1} parent=0 // pred_check_branch
    %15 = sbr.rel (0) target = $region5
  $region4: #{discriminator_forward.1} parent=0 // pred_region
    _
  $region5: #{discriminator_forward.1} parent=0 // pred_fallthru
    _
  // Predicated region
  $region6: #{discriminator_forward.1} parent=0 // pred_check
    _
  $region7: #{discriminator_forward.1} parent=0 // pred_check_branch
    %17 = sbr.rel (0) target = $region9
  $region8: #{discriminator_forward.1} parent=0 // pred_region
    _
  $region9: #{discriminator_forward.1} parent=0 // pred_fallthru
    _
  // Predicated region
  $region10: #{discriminator_forward.1} parent=0 // pred_check
    _
  $region11: #{discriminator_forward.1} parent=0 // pred_check_branch
    %19 = sbr.rel (0) target = $region13
  $region12: #{discriminator_forward.1} parent=0 // pred_region
    _
  $region13: #{discriminator_forward.1} parent=0 // pred_fallthru
    _
  // Predicated region
  $region14: #{discriminator_forward.1} parent=0 // pred_check
    _
  $region15: #{discriminator_forward.1} parent=0 // pred_check_branch
    %21 = sbr.rel (0) target = $region17
  $region16: #{discriminator_forward.1} parent=0 // pred_region
    _
  $region17: #{discriminator_forward.1} parent=0 // pred_fallthru
    _
  // Predicated region
  $region18: #{discriminator_forward.1} parent=0 // pred_check
    _
  $region19: #{discriminator_forward.1} parent=0 // pred_check_branch
    %23 = sbr.rel (0) target = $region21
  $region20: #{discriminator_forward.1} parent=0 // pred_region
    _
  $region21: #{discriminator_forward.1} parent=0 // pred_fallthru
    _
  // Predicated region
  $region22: #{discriminator_forward.1} parent=0 // pred_check
    _
  $region23: #{discriminator_forward.1} parent=0 // pred_check_branch
    %25 = sbr.rel (0) target = $region25
  $region24: #{discriminator_forward.1} parent=0 // pred_region
    _
  $region25: #{discriminator_forward.1} parent=0 // pred_fallthru
    _
  // Predicated region
  $region26: #{discriminator_forward.1} parent=0 // pred_check
    _
  $region27: #{discriminator_forward.1} parent=0 // pred_check_branch
    %27 = sbr.rel (0) target = $region29
  $region28: #{discriminator_forward.1} parent=0 // pred_region
    _
  $region29: #{discriminator_forward.1} parent=0 // pred_fallthru
    _
  %v28 = vld [vmem:[%s0] sm:$0xff]
  %v29 = vld [vmem:[%s0 + $0x8] sm:$0xff]
  %v30 = vld [vmem:[%s0 + $0x10] sm:$0xff]
  %v31 = vld [vmem:[%s0 + $0x18] sm:$0xff]
  %v32 = vld [vmem:[%s0 + $0x20] sm:$0xff]
  %v33 = vld [vmem:[%s0 + $0x28] sm:$0xff]
  %v34 = vld [vmem:[%s0 + $0x30] sm:$0xff]
  %v35 = vld [vmem:[%s0 + $0x38] sm:$0xff]
  %v36 = vld [vmem:[%s0 + $0x40] sm:$0xff]
  %v37 = vld [vmem:[%s0 + $0x48] sm:$0xff]
  %v38 = vld [vmem:[%s0 + $0x50] sm:$0xff]
  %v39 = vld [vmem:[%s0 + $0x58] sm:$0xff]
  %v40 = vld [vmem:[%s0 + $0x60] sm:$0xff]
  %v41 = vld [vmem:[%s0 + $0x68] sm:$0xff]
  %v42 = vld [vmem:[%s0 + $0x70] sm:$0xff]
  %v43 = vld [vmem:[%s0 + $0x78] sm:$0xff]
  %v44 = vld [vmem:[%s1] sm:$0xff]
  %v45 = vld [vmem:[%s1 + $0x8] sm:$0xff]
  %v46 = vld [vmem:[%s1 + $0x10] sm:$0xff]
  %v47 = vld [vmem:[%s1 + $0x18] sm:$0xff]
  %v48 = vld [vmem:[%s1 + $0x20] sm:$0xff]
  %v49 = vld [vmem:[%s1 + $0x28] sm:$0xff]
  %v50 = vld [vmem:[%s1 + $0x30] sm:$0xff]
  %v51 = vld [vmem:[%s1 + $0x38] sm:$0xff]
  %v52 = vld [vmem:[%s2] sm:$0xff]
  %v53 = vld [vmem:[%s2 + $0x8] sm:$0xff]
  %v54 = vld [vmem:[%s2 + $0x10] sm:$0xff]
  %v55 = vld [vmem:[%s2 + $0x18] sm:$0xff]
  %v56 = vld [vmem:[%s2 + $0x20] sm:$0xff]
  %v57 = vld [vmem:[%s2 + $0x28] sm:$0xff]
  %v58 = vld [vmem:[%s2 + $0x30] sm:$0xff]
  %v59 = vld [vmem:[%s2 + $0x38] sm:$0xff]
  %61 = vset.pattern.permute.xlu0 0
  %62 = vperm.xlu0 %61, %v52
  %v63 = vpop.permute.xlu0 %62
  %66 = vset.pattern.permute.xlu0 0
  %67 = vperm.xlu0 %66, %v53
  %v68 = vpop.permute.xlu0 %67
  %71 = vset.pattern.permute.xlu0 0
  %72 = vperm.xlu0 %71, %v54
  %v73 = vpop.permute.xlu0 %72
  %76 = vset.pattern.permute.xlu0 0
  %77 = vperm.xlu0 %76, %v55
  %v78 = vpop.permute.xlu0 %77
  %81 = vset.pattern.permute.xlu0 0
  %82 = vperm.xlu0 %81, %v56
  %v83 = vpop.permute.xlu0 %82
  %86 = vset.pattern.permute.xlu0 0
  %87 = vperm.xlu0 %86, %v57
  %v88 = vpop.permute.xlu0 %87
  %91 = vset.pattern.permute.xlu0 0
  %92 = vperm.xlu0 %91, %v58
  %v93 = vpop.permute.xlu0 %92
  %96 = vset.pattern.permute.xlu0 0
  %97 = vperm.xlu0 %96, %v59
  %v98 = vpop.permute.xlu0 %97
  %vm100 = vcmask 31744
  %v102 = vsel %vm100, %v44, 0
  %v105 = vsel %vm100, %v45, 0
  %v108 = vsel %vm100, %v46, 0
  %v111 = vsel %vm100, %v47, 0
  %v114 = vsel %vm100, %v48, 0
  %v117 = vsel %vm100, %v49, 0
  %v120 = vsel %vm100, %v50, 0
  %v123 = vsel %vm100, %v51, 0
  %v126 = vsel %vm100, %v28, 0
  %v129 = vsel %vm100, %v29, 0
  %v132 = vsel %vm100, %v30, 0
  %v135 = vsel %vm100, %v31, 0
  %v138 = vsel %vm100, %v32, 0
  %v141 = vsel %vm100, %v33, 0
  %v144 = vsel %vm100, %v34, 0
  %v147 = vsel %vm100, %v35, 0
  %v150 = vsel %vm100, %v36, 0
  %v153 = vsel %vm100, %v37, 0
  %v156 = vsel %vm100, %v38, 0
  %v159 = vsel %vm100, %v39, 0
  %v162 = vsel %vm100, %v40, 0
  %v165 = vsel %vm100, %v41, 0
  %v168 = vsel %vm100, %v42, 0
  %v171 = vsel %vm100, %v43, 0
  %173 = vmatprep.subr.mxu0 0.0
  %174 = vmatpush1.xpose.msra.mxu0 %v126
  %175 = vmatprep.subr.mxu0 0.0
  %176 = vmatpush1.xpose.msra.mxu0 %v129
  %177 = vmatprep.subr.mxu0 0.0
  %178 = vmatpush1.xpose.msra.mxu0 %v132
  %179 = vmatprep.subr.mxu0 0.0
  %180 = vmatpush1.xpose.msra.mxu0 %v135
  %181 = vmatprep.subr.mxu0 0.0
  %182 = vmatpush1.xpose.msra.mxu0 %v138
  %183 = vmatprep.subr.mxu0 0.0
  %184 = vmatpush1.xpose.msra.mxu0 %v141
  %185 = vmatprep.subr.mxu0 0.0
  %186 = vmatpush1.xpose.msra.mxu0 %v144
  %187 = vmatprep.subr.mxu0 0.0
  %188 = vmatpush1.xpose.msra.mxu0 %v147
  %189 = vmatprep.subr.mxu0 0.0
  %190 = vmatpush1.xpose.msra.mxu0 %v150
  %191 = vmatprep.subr.mxu0 0.0
  %192 = vmatpush1.xpose.msra.mxu0 %v153
  %193 = vmatprep.subr.mxu0 0.0
  %194 = vmatpush1.xpose.msra.mxu0 %v156
  %195 = vmatprep.subr.mxu0 0.0
  %196 = vmatpush1.xpose.msra.mxu0 %v159
  %197 = vmatprep.subr.mxu0 0.0
  %198 = vmatpush1.xpose.msra.mxu0 %v162
  %199 = vmatprep.subr.mxu0 0.0
  %200 = vmatpush1.xpose.msra.mxu0 %v165
  %201 = vmatprep.subr.mxu0 0.0
  %202 = vmatpush1.xpose.msra.mxu0 %v168
  %203 = vmatprep.subr.mxu0 0.0
  %204 = vmatpush1.xpose.msra.mxu0 %v171
  %205 = vmatprep.subr.mxu0 0.0
  %206 = vmatpush1.xpose.msra.mxu0 0.0
  %207 = vmatprep.subr.mxu0 0.0
  %208 = vmatpush1.xpose.msra.mxu0 0.0
  %209 = vmatprep.subr.mxu0 0.0
  %210 = vmatpush1.xpose.msra.mxu0 0.0
  %211 = vmatprep.subr.mxu0 0.0
  %212 = vmatpush1.xpose.msra.mxu0 0.0
  %213 = vmatprep.subr.mxu0 0.0
  %214 = vmatpush1.xpose.msra.mxu0 0.0
  %215 = vmatprep.subr.mxu0 0.0
  %216 = vmatpush1.xpose.msra.mxu0 0.0
  %217 = vmatprep.subr.mxu0 0.0
  %218 = vmatpush1.xpose.msra.mxu0 0.0
  %219 = vmatprep.subr.mxu0 0.0
  %220 = vmatpush1.xpose.msra.mxu0 0.0
  %221 = vmatprep.subr.mxu0 0.0
  %222 = vmatpush1.xpose.msra.mxu0 0.0
  %223 = vmatprep.subr.mxu0 0.0
  %224 = vmatpush1.xpose.msra.mxu0 0.0
  %225 = vmatprep.subr.mxu0 0.0
  %226 = vmatpush1.xpose.msra.mxu0 0.0
  %227 = vmatprep.subr.mxu0 0.0
  %228 = vmatpush1.xpose.msra.mxu0 0.0
  %229 = vmatprep.subr.mxu0 0.0
  %230 = vmatpush1.xpose.msra.mxu0 0.0
  %231 = vmatprep.subr.mxu0 0.0
  %232 = vmatpush1.xpose.msra.mxu0 0.0
  %233 = vmatprep.subr.mxu0 0.0
  %234 = vmatpush1.xpose.msra.mxu0 0.0
  %235 = vmatprep.subr.mxu0 0.0
  %236 = vmatpush1.xpose.msra.mxu0 0.0
  %237 = vmatprep.mubr.f32.mxu0 0.0
  %238 = vmatmul.mubr.f32.gmra.mrb[0].mxu0 %v102
  %v239 = vpop.f32.mrb[0].mxu0
  %v240 = vadd.f32 %v63, %v239
  %v241 = vpop.f32.mrb[0].mxu0
  %242 = vmatprep.mubr.f32.mxu0 0.0
  %243 = vmatmul.mubr.f32.gmra.mrb[0].mxu0 %v105
  %v244 = vpop.f32.mrb[0].mxu0
  %v245 = vadd.f32 %v68, %v244
  %v246 = vpop.f32.mrb[0].mxu0
  %247 = vmatprep.mubr.f32.mxu0 0.0
  %248 = vmatmul.mubr.f32.gmra.mrb[0].mxu0 %v108
  %v249 = vpop.f32.mrb[0].mxu0
  %v250 = vadd.f32 %v73, %v249
  %v251 = vpop.f32.mrb[0].mxu0
  %252 = vmatprep.mubr.f32.mxu0 0.0
  %253 = vmatmul.mubr.f32.gmra.mrb[0].mxu0 %v111
  %v254 = vpop.f32.mrb[0].mxu0
  %v255 = vadd.f32 %v78, %v254
  %v256 = vpop.f32.mrb[0].mxu0
  %257 = vmatprep.mubr.f32.mxu0 0.0
  %258 = vmatmul.mubr.f32.gmra.mrb[0].mxu0 %v114
  %v259 = vpop.f32.mrb[0].mxu0
  %v260 = vadd.f32 %v83, %v259
  %v261 = vpop.f32.mrb[0].mxu0
  %262 = vmatprep.mubr.f32.mxu0 0.0
  %263 = vmatmul.mubr.f32.gmra.mrb[0].mxu0 %v117
  %v264 = vpop.f32.mrb[0].mxu0
  %v265 = vadd.f32 %v88, %v264
  %v266 = vpop.f32.mrb[0].mxu0
  %267 = vmatprep.mubr.f32.mxu0 0.0
  %268 = vmatmul.mubr.f32.gmra.mrb[0].mxu0 %v120
  %v269 = vpop.f32.mrb[0].mxu0
  %v270 = vadd.f32 %v93, %v269
  %v271 = vpop.f32.mrb[0].mxu0
  %272 = vmatprep.mubr.f32.mxu0 0.0
  %273 = vmatmul.mubr.f32.gmra.mrb[0].mxu0 %v123
  %v274 = vpop.f32.mrb[0].mxu0
  %v275 = vadd.f32 %v98, %v274
  %v276 = vpop.f32.mrb[0].mxu0
  %277 = vdwg.mxu0
  %v278 = vmul.f32 %v240, 0.2
  %v279 = vmul.f32 %v245, 0.2
  %v280 = vmul.f32 %v250, 0.2
  %v281 = vmul.f32 %v255, 0.2
  %v282 = vmul.f32 %v260, 0.2
  %v283 = vmul.f32 %v265, 0.2
  %v284 = vmul.f32 %v270, 0.2
  %v285 = vmul.f32 %v275, 0.2
  %v286 = vmax.f32 %v240, %v278
  %v287 = vmax.f32 %v245, %v279
  %v288 = vmax.f32 %v250, %v280
  %v289 = vmax.f32 %v255, %v281
  %v290 = vmax.f32 %v260, %v282
  %v291 = vmax.f32 %v265, %v283
  %v292 = vmax.f32 %v270, %v284
  %v293 = vmax.f32 %v275, %v285
  %v294 = vld [vmem:[%s3] sm:$0xff]
  %v295 = vld [vmem:[%s3 + $0x8] sm:$0xff]
  %v296 = vld [vmem:[%s3 + $0x10] sm:$0xff]
  %v297 = vld [vmem:[%s3 + $0x18] sm:$0xff]
  %v298 = vld [vmem:[%s3 + $0x20] sm:$0xff]
  %v299 = vld [vmem:[%s3 + $0x28] sm:$0xff]
  %v300 = vld [vmem:[%s3 + $0x30] sm:$0xff]
  %v301 = vld [vmem:[%s3 + $0x38] sm:$0xff]
  %v302 = vld [vmem:[%s4] sm:$0xff]
  %v303 = vld [vmem:[%s4 + $0x8] sm:$0xff]
  %v304 = vld [vmem:[%s4 + $0x10] sm:$0xff]
  %v305 = vld [vmem:[%s4 + $0x18] sm:$0xff]
  %v306 = vld [vmem:[%s4 + $0x20] sm:$0xff]
  %v307 = vld [vmem:[%s4 + $0x28] sm:$0xff]
  %v308 = vld [vmem:[%s4 + $0x30] sm:$0xff]
  %v309 = vld [vmem:[%s4 + $0x38] sm:$0xff]
  %311 = vset.pattern.permute.xlu0 0
  %312 = vperm.xlu0 %311, %v302
  %v313 = vpop.permute.xlu0 %312
  %316 = vset.pattern.permute.xlu0 0
  %317 = vperm.xlu0 %316, %v303
  %v318 = vpop.permute.xlu0 %317
  %321 = vset.pattern.permute.xlu0 0
  %322 = vperm.xlu0 %321, %v304
  %v323 = vpop.permute.xlu0 %322
  %326 = vset.pattern.permute.xlu0 0
  %327 = vperm.xlu0 %326, %v305
  %v328 = vpop.permute.xlu0 %327
  %331 = vset.pattern.permute.xlu0 0
  %332 = vperm.xlu0 %331, %v306
  %v333 = vpop.permute.xlu0 %332
  %336 = vset.pattern.permute.xlu0 0
  %337 = vperm.xlu0 %336, %v307
  %v338 = vpop.permute.xlu0 %337
  %341 = vset.pattern.permute.xlu0 0
  %342 = vperm.xlu0 %341, %v308
  %v343 = vpop.permute.xlu0 %342
  %346 = vset.pattern.permute.xlu0 0
  %347 = vperm.xlu0 %346, %v309
  %v348 = vpop.permute.xlu0 %347
  %vm350 = vcmask 523264
  %v352 = vsel %vm350, %v294, 0
  %v355 = vsel %vm350, %v295, 0
  %v358 = vsel %vm350, %v296, 0
  %v361 = vsel %vm350, %v297, 0
  %v364 = vsel %vm350, %v298, 0
  %v367 = vsel %vm350, %v299, 0
  %v370 = vsel %vm350, %v300, 0
  %v373 = vsel %vm350, %v301, 0
  %375 = vmatprep.subr.mxu0 0.0
  %376 = vmatpush1.msra.mxu0 %v286
  %377 = vmatprep.subr.mxu0 0.0
  %378 = vmatpush1.msra.mxu0 %v287
  %379 = vmatprep.subr.mxu0 0.0
  %380 = vmatpush1.msra.mxu0 %v288
  %381 = vmatprep.subr.mxu0 0.0
  %382 = vmatpush1.msra.mxu0 %v289
  %383 = vmatprep.subr.mxu0 0.0
  %384 = vmatpush1.msra.mxu0 %v290
  %385 = vmatprep.subr.mxu0 0.0
  %386 = vmatpush1.msra.mxu0 %v291
  %387 = vmatprep.subr.mxu0 0.0
  %388 = vmatpush1.msra.mxu0 %v292
  %389 = vmatprep.subr.mxu0 0.0
  %390 = vmatpush1.msra.mxu0 %v293
  %391 = vmatprep.subr.mxu0 0.0
  %392 = vmatpush1.msra.mxu0 0.0
  %393 = vmatprep.subr.mxu0 0.0
  %394 = vmatpush1.msra.mxu0 0.0
  %395 = vmatprep.subr.mxu0 0.0
  %396 = vmatpush1.msra.mxu0 0.0
  %397 = vmatprep.subr.mxu0 0.0
  %398 = vmatpush1.msra.mxu0 0.0
  %399 = vmatprep.subr.mxu0 0.0
  %400 = vmatpush1.msra.mxu0 0.0
  %401 = vmatprep.subr.mxu0 0.0
  %402 = vmatpush1.msra.mxu0 0.0
  %403 = vmatprep.subr.mxu0 0.0
  %404 = vmatpush1.msra.mxu0 0.0
  %405 = vmatprep.subr.mxu0 0.0
  %406 = vmatpush1.msra.mxu0 0.0
  %407 = vmatprep.subr.mxu0 0.0
  %408 = vmatpush1.msra.mxu0 0.0
  %409 = vmatprep.subr.mxu0 0.0
  %410 = vmatpush1.msra.mxu0 0.0
  %411 = vmatprep.subr.mxu0 0.0
  %412 = vmatpush1.msra.mxu0 0.0
  %413 = vmatprep.subr.mxu0 0.0
  %414 = vmatpush1.msra.mxu0 0.0
  %415 = vmatprep.subr.mxu0 0.0
  %416 = vmatpush1.msra.mxu0 0.0
  %417 = vmatprep.subr.mxu0 0.0
  %418 = vmatpush1.msra.mxu0 0.0
  %419 = vmatprep.subr.mxu0 0.0
  %420 = vmatpush1.msra.mxu0 0.0
  %421 = vmatprep.subr.mxu0 0.0
  %422 = vmatpush1.msra.mxu0 0.0
  %423 = vmatprep.subr.mxu0 0.0
  %424 = vmatpush1.msra.mxu0 0.0
  %425 = vmatprep.subr.mxu0 0.0
  %426 = vmatpush1.msra.mxu0 0.0
  %427 = vmatprep.subr.mxu0 0.0
  %428 = vmatpush1.msra.mxu0 0.0
  %429 = vmatprep.subr.mxu0 0.0
  %430 = vmatpush1.msra.mxu0 0.0
  %431 = vmatprep.subr.mxu0 0.0
  %432 = vmatpush1.msra.mxu0 0.0
  %433 = vmatprep.subr.mxu0 0.0
  %434 = vmatpush1.msra.mxu0 0.0
  %435 = vmatprep.subr.mxu0 0.0
  %436 = vmatpush1.msra.mxu0 0.0
  %437 = vmatprep.subr.mxu0 0.0
  %438 = vmatpush1.msra.mxu0 0.0
  %439 = vmatprep.mubr.f32.mxu0 0.0
  %440 = vmatmul.mubr.f32.gmra.mrb[0].mxu0 %v352
  %v441 = vpop.f32.mrb[0].mxu0
  %v442 = vadd.f32 %v313, %v441
  %v443 = vpop.f32.mrb[0].mxu0
  %444 = vmatprep.mubr.f32.mxu0 0.0
  %445 = vmatmul.mubr.f32.gmra.mrb[0].mxu0 %v355
  %v446 = vpop.f32.mrb[0].mxu0
  %v447 = vadd.f32 %v318, %v446
  %v448 = vpop.f32.mrb[0].mxu0
  %449 = vmatprep.mubr.f32.mxu0 0.0
  %450 = vmatmul.mubr.f32.gmra.mrb[0].mxu0 %v358
  %v451 = vpop.f32.mrb[0].mxu0
  %v452 = vadd.f32 %v323, %v451
  %v453 = vpop.f32.mrb[0].mxu0
  %454 = vmatprep.mubr.f32.mxu0 0.0
  %455 = vmatmul.mubr.f32.gmra.mrb[0].mxu0 %v361
  %v456 = vpop.f32.mrb[0].mxu0
  %v457 = vadd.f32 %v328, %v456
  %v458 = vpop.f32.mrb[0].mxu0
  %459 = vmatprep.mubr.f32.mxu0 0.0
  %460 = vmatmul.mubr.f32.gmra.mrb[0].mxu0 %v364
  %v461 = vpop.f32.mrb[0].mxu0
  %v462 = vadd.f32 %v333, %v461
  %v463 = vpop.f32.mrb[0].mxu0
  %464 = vmatprep.mubr.f32.mxu0 0.0
  %465 = vmatmul.mubr.f32.gmra.mrb[0].mxu0 %v367
  %v466 = vpop.f32.mrb[0].mxu0
  %v467 = vadd.f32 %v338, %v466
  %v468 = vpop.f32.mrb[0].mxu0
  %469 = vmatprep.mubr.f32.mxu0 0.0
  %470 = vmatmul.mubr.f32.gmra.mrb[0].mxu0 %v370
  %v471 = vpop.f32.mrb[0].mxu0
  %v472 = vadd.f32 %v343, %v471
  %v473 = vpop.f32.mrb[0].mxu0
  %474 = vmatprep.mubr.f32.mxu0 0.0
  %475 = vmatmul.mubr.f32.gmra.mrb[0].mxu0 %v373
  %v476 = vpop.f32.mrb[0].mxu0
  %v477 = vadd.f32 %v348, %v476
  %v478 = vpop.f32.mrb[0].mxu0
  %479 = vdwg.mxu0
  %v480 = vmul.f32 %v442, 0.2
  %v481 = vmul.f32 %v447, 0.2
  %v482 = vmul.f32 %v452, 0.2
  %v483 = vmul.f32 %v457, 0.2
  %v484 = vmul.f32 %v462, 0.2
  %v485 = vmul.f32 %v467, 0.2
  %v486 = vmul.f32 %v472, 0.2
  %v487 = vmul.f32 %v477, 0.2
  %v488 = vmax.f32 %v442, %v480
  %v489 = vmax.f32 %v447, %v481
  %v490 = vmax.f32 %v452, %v482
  %v491 = vmax.f32 %v457, %v483
  %v492 = vmax.f32 %v462, %v484
  %v493 = vmax.f32 %v467, %v485
  %v494 = vmax.f32 %v472, %v486
  %v495 = vmax.f32 %v477, %v487
  %v496 = vld [vmem:[%s5] sm:$0xff]
  %v497 = vld [vmem:[%s5 + $0x8] sm:$0xff]
  %v498 = vld [vmem:[%s5 + $0x10] sm:$0xff]
  %v499 = vld [vmem:[%s5 + $0x18] sm:$0xff]
  %v500 = vld [vmem:[%s5 + $0x20] sm:$0xff]
  %v501 = vld [vmem:[%s5 + $0x28] sm:$0xff]
  %v502 = vld [vmem:[%s5 + $0x30] sm:$0xff]
  %v503 = vld [vmem:[%s5 + $0x38] sm:$0xff]
  %505 = vset.pattern.permute.xlu0 0
  %506 = vperm.xlu0 %505, %v496
  %v507 = vpop.permute.xlu0 %506
  %510 = vset.pattern.permute.xlu0 0
  %511 = vperm.xlu0 %510, %v497
  %v512 = vpop.permute.xlu0 %511
  %515 = vset.pattern.permute.xlu0 0
  %516 = vperm.xlu0 %515, %v498
  %v517 = vpop.permute.xlu0 %516
  %520 = vset.pattern.permute.xlu0 0
  %521 = vperm.xlu0 %520, %v499
  %v522 = vpop.permute.xlu0 %521
  %525 = vset.pattern.permute.xlu0 0
  %526 = vperm.xlu0 %525, %v500
  %v527 = vpop.permute.xlu0 %526
  %530 = vset.pattern.permute.xlu0 0
  %531 = vperm.xlu0 %530, %v501
  %v532 = vpop.permute.xlu0 %531
  %535 = vset.pattern.permute.xlu0 0
  %536 = vperm.xlu0 %535, %v502
  %v537 = vpop.permute.xlu0 %536
  %540 = vset.pattern.permute.xlu0 0
  %541 = vperm.xlu0 %540, %v503
  %v542 = vpop.permute.xlu0 %541
  %v544 = vmul.f32 %v488, %v507
  %v545 = vmul.f32 %v489, %v512
  %v546 = vmul.f32 %v490, %v517
  %v547 = vmul.f32 %v491, %v522
  %v548 = vmul.f32 %v492, %v527
  %v549 = vmul.f32 %v493, %v532
  %v550 = vmul.f32 %v494, %v537
  %v551 = vmul.f32 %v495, %v542
  %v552 = vadd.f32 %v544, %v545
  %v553 = vadd.f32 %v552, %v546
  %v554 = vadd.f32 %v553, %v547
  %v555 = vadd.f32 %v554, %v548
  %v556 = vadd.f32 %v555, %v549
  %v557 = vadd.f32 %v556, %v550
  %v558 = vadd.f32 %v557, %v551
  %v559 = vrot.slane %v558, 4
  %v560 = vadd.f32 %v558, %v559
  %v561 = vrot.slane %v560, 2
  %v562 = vadd.f32 %v560, %v561
  %v563 = vrot.slane %v562, 1
  %v564 = vadd.f32 %v562, %v563
  %v565 = vld [vmem:[#allocation2] sm:$0x1]
  %567 = vset.pattern.permute.xlu0 0
  %568 = vperm.xlu0 %567, %v565
  %v569 = vpop.permute.xlu0 %568
  %v571 = vlaneseq
  %v572 = vshrl.u32 %v571, 7
  %v573 = vsub.s32 0, %v572
  %v574 = vrot.slane %v569, %v573
  %v575 = vadd.f32 %v564, %v574
  %v576 = vxor.u32 %v575, 2147483648
  %v577 = vmul.f32 %v576, 1.442695
  %v578 = vpow.pop %v577
  %v579 = vadd.f32 %v578, 1.0
  %v580 = vrcp.pop %v579
  %v581 = vmul.f32 1.0, %v580
  %582 = vst [vmem:[%s7] sm:$0x1] %v581
  // Predicated region
  $region30: #{discriminator_forward.1} parent=0 // pred_check
    _
  $region31: #{discriminator_forward.1} parent=0 // pred_check_branch
    %584 = sbr.rel (0) target = $region33
  $region32: #{discriminator_forward.1} parent=0 // pred_region
    _
  $region33: #{discriminator_forward.1} parent=0 // pred_fallthru
    _
  // Predicated region
  $region34: #{discriminator_forward.1} parent=0 // pred_check
    _
  $region35: #{discriminator_forward.1} parent=0 // pred_check_branch
    %586 = sbr.rel (0) target = $region37
  $region36: #{discriminator_forward.1} parent=0 // pred_region
    _
  $region37: #{discriminator_forward.1} parent=0 // pred_fallthru
    _

</llo_original>
